<compile_context>
chip_gen: v6e
topology: v6e:2x2x1
jax: 0.10.0
libtpu: 0.0.40
codegen_flags: <defaults>
</compile_context>

<pallas_src>
import jax
import jax.numpy as jnp
from jax.experimental import pallas as pl
from jax.experimental.pallas import tpu as pltpu

LANE = 128  # TPU lane width (last dim)


def _round_up(n, m):
    return (n + m - 1) // m * m


def mlp_kernel(x_ref, w1_ref, b1_ref, w2_ref, b2_ref, out_ref):
    # fc1: (tm, D_in) @ (D_in, Hp) on the MXU with f32 accumulation.
    h = jnp.dot(x_ref[...], w1_ref[...], preferred_element_type=jnp.float32)
    h = jnp.maximum(h + b1_ref[...], 0.0)        # bias + ReLU in f32 (v5e VPU has no bf16)
    h = h.astype(w2_ref.dtype)                   # feed the MXU in the weight dtype
    # fc2: (tm, Hp) @ (Hp, Dp), f32 accumulation, bias in f32.
    o = jnp.dot(h, w2_ref[...], preferred_element_type=jnp.float32)
    out_ref[...] = (o + b2_ref[...]).astype(out_ref.dtype)


def prepare_mlp_params(w1, b1, w2, b2, *, compute_dtype=jnp.bfloat16):
    """Pad/cast parameters ONCE (cache the result outside the hot path).

    w1: (D_in, H)  pre-transposed so y = x @ W + b (matches nn.Linear semantics)
    b1: (H,) or (1, H)
    w2: (H, D_out)
    b2: (D_out,) or (1, D_out)
    """
    D_in, H = w1.shape
    D_out = w2.shape[1]
    Hp = _round_up(H, LANE)       # N of fc1 / K of fc2 (lane-dense)
    Dp = _round_up(D_out, LANE)   # N of fc2 / output lane width (unmasked vst)

    b1 = jnp.asarray(b1, jnp.float32).reshape(1, H)
    b2 = jnp.asarray(b2, jnp.float32).reshape(1, D_out)

    # Zero padding is mathematically inert (zero weight cols/rows, zero biases,
    # ReLU(0) = 0).  Weights in compute_dtype (bf16 MXU fast path), biases f32.
    w1p = jnp.zeros((D_in, Hp), compute_dtype).at[:, :H].set(w1.astype(compute_dtype))
    b1p = jnp.zeros((1, Hp), jnp.float32).at[:, :H].set(b1)
    w2p = jnp.zeros((Hp, Dp), compute_dtype).at[:H, :D_out].set(w2.astype(compute_dtype))
    b2p = jnp.zeros((1, Dp), jnp.float32).at[:, :D_out].set(b2)
    return {"w1": w1p, "b1": b1p, "w2": w2p, "b2": b2p, "d_out": D_out}


def simple_mlp(x, params, *, block_m=512, out_dtype=None):
    """Fused fc1 -> ReLU -> fc2.  x: (B, D_in).  Returns (B, D_out)."""
    w1p, b1p, w2p, b2p = params["w1"], params["b1"], params["w2"], params["b2"]
    D_out = params["d_out"]
    compute_dtype = w1p.dtype
    B, D_in = x.shape
    Hp = w1p.shape[1]
    Dp = w2p.shape[1]
    out_dtype = x.dtype if out_dtype is None else out_dtype

    w_itemsize = jnp.dtype(compute_dtype).itemsize
    out_itemsize = jnp.dtype(out_dtype).itemsize
    # Sublane packing: bf16 packs 2 rows/sublane, int8/fp8 pack 4.
    row_mult = {1: 32, 2: 16}.get(w_itemsize, 8)

    # --- batch tile size -----------------------------------------------------
    tm = _round_up(min(block_m, _round_up(B, row_mult)), row_mult)
    # Prefer >=2 grid steps when each tile keeps >=256 rows: near the v5e/v6e
    # streaming roofline and lets "parallel" split the batch across both
    # TensorCores on v7x.
    half = _round_up(pl.cdiv(B, 2), row_mult)
    if half >= 256:
        tm = min(tm, half)

    # --- generation-aware VMEM budget ----------------------------------------
    try:
        vmem_cap = int(pltpu.get_tpu_info().vmem_capacity_bytes)
    except Exception:
        vmem_cap = 64 << 20  # conservative fallback (v7x per-TensorCore VMEM)
    headroom = 8 << 20

    def vmem_needed(rows):
        return (2 * rows * D_in * w_itemsize               # x tile, double-buffered
                + 2 * (D_in * Hp + Hp * Dp) * w_itemsize   # weights (worst case 2 bufs)
                + 2 * (Hp + Dp) * 4                        # biases
                + 2 * rows * Dp * out_itemsize)            # out tile, double-buffered

    while vmem_needed(tm) > vmem_cap - headroom and tm > row_mult:
        tm = max(row_mult, _round_up(tm // 2, row_mult))
    # TODO(synk): if the resident weights alone exceed ~half of VMEM
    # (production D_in/H), switch to an H-tiled grid axis + f32 accumulator.

    # Never clamp below the actual requirement; cap at chip capacity - headroom.
    vmem_limit = int(min(vmem_cap - (4 << 20), max(2 * vmem_needed(tm), 32 << 20)))
    vmem_limit = int(max(vmem_limit, vmem_needed(tm) + (2 << 20)))

    # --- input cast (+ tiny pad only when a single tile exceeds B) -----------
    if tm > B:
        # Only happens for small/misaligned batches (B < block_m); copies at
        # most one tile.  Large batches are never padded: the ragged last tile
        # over-reads x rows that only feed output rows masked on store.
        xc = jnp.zeros((tm, D_in), compute_dtype).at[:B].set(x.astype(compute_dtype))
    else:
        xc = x.astype(compute_dtype)
    Bp = xc.shape[0]
    grid = (pl.cdiv(Bp, tm),)

    # Advisory cost estimate so XLA can schedule around the call.
    cost = pl.CostEstimate(
        flops=int(2 * B * (D_in * Hp + Hp * Dp)),
        transcendentals=0,
        bytes_accessed=int((B * D_in + D_in * Hp + Hp * Dp) * w_itemsize
                           + (Hp + Dp) * 4 + B * Dp * out_itemsize),
    )

    def call(resident_kwargs):
        return pl.pallas_call(
            mlp_kernel,
            out_shape=jax.ShapeDtypeStruct((Bp, Dp), out_dtype),
            grid_spec=pltpu.PrefetchScalarGridSpec(
                num_scalar_prefetch=0,
                grid=grid,
                in_specs=[
                    pl.BlockSpec((tm, D_in), lambda i: (i, 0)),                    # x: batch-tiled
                    pl.BlockSpec((D_in, Hp), lambda i: (0, 0), **resident_kwargs),  # w1: resident
                    pl.BlockSpec((1, Hp), lambda i: (0, 0), **resident_kwargs),     # b1: resident
                    pl.BlockSpec((Hp, Dp), lambda i: (0, 0), **resident_kwargs),    # w2: resident
                    pl.BlockSpec((1, Dp), lambda i: (0, 0), **resident_kwargs),     # b2: resident
                ],
                out_specs=pl.BlockSpec((tm, Dp), lambda i: (i, 0)),
            ),
            compiler_params=pltpu.CompilerParams(
                # Independent batch tiles: shards across both TensorCores on v7x.
                dimension_semantics=("parallel",),
                vmem_limit_bytes=vmem_limit,
            ),
            cost_estimate=cost,
        )(xc, w1p, b1p, w2p, b2p)

    try:
        # Constant-index_map operands don't need a second pipeline buffer.
        out = call({"pipeline_mode": pl.Buffered(1)})
    except Exception:
        out = call({})

    return out[:B, :D_out]


if __name__ == "__main__":
    # Shapes implied by the module: batch=8, input_size=16, hidden_size=64,
    # output_size=4 (number of classes).
    batch, input_size, hidden_size, output_size = 8, 16, 64, 4

    key = jax.random.PRNGKey(0)
    kx, kw1, kb1, kw2, kb2 = jax.random.split(key, 5)

    x = jax.random.normal(kx, (batch, input_size), dtype=jnp.float32)

    # Deterministic init mimicking nn.Linear's uniform(-1/sqrt(fan_in), +).
    bound1 = 1.0 / jnp.sqrt(jnp.float32(input_size))
    w1 = jax.random.uniform(kw1, (input_size, hidden_size), jnp.float32, -bound1, bound1)
    b1 = jax.random.uniform(kb1, (hidden_size,), jnp.float32, -bound1, bound1)
    bound2 = 1.0 / jnp.sqrt(jnp.float32(hidden_size))
    w2 = jax.random.uniform(kw2, (hidden_size, output_size), jnp.float32, -bound2, bound2)
    b2 = jax.random.uniform(kb2, (output_size,), jnp.float32, -bound2, bound2)

    # Plain-JAX reference (highest matmul precision).
    h_ref = jnp.maximum(jnp.dot(x, w1, precision="highest") + b1[None, :], 0.0)
    ref = jnp.dot(h_ref, w2, precision="highest") + b2[None, :]

    # Default bf16 MXU path (weights prepared/padded once, reused per call).
    params_bf16 = prepare_mlp_params(w1, b1, w2, b2)
    out_bf16 = jax.block_until_ready(simple_mlp(x, params_bf16))
    assert out_bf16.shape == (batch, output_size)
    assert jnp.allclose(out_bf16, ref, atol=5e-2, rtol=5e-2)

    # f32 path (tight tolerance).
    params_f32 = prepare_mlp_params(w1, b1, w2, b2, compute_dtype=jnp.float32)
    out_f32 = jax.block_until_ready(simple_mlp(x, params_f32))
    assert out_f32.shape == (batch, output_size)
    assert jnp.allclose(out_f32, ref, atol=1e-4, rtol=1e-4)

    print("KERNEL_OK")
</pallas_src>

<mosaic_0001>
module attributes {stable_mosaic.version = 11 : i64} {
  func.func @mlp_kernel(%arg0: i32, %arg1: memref<16x16xbf16, #tpu.memory_space<vmem>>, %arg2: memref<16x128xbf16, #tpu.memory_space<vmem>>, %arg3: memref<1x128xf32, #tpu.memory_space<vmem>>, %arg4: memref<128x128xbf16, #tpu.memory_space<vmem>>, %arg5: memref<1x128xf32, #tpu.memory_space<vmem>>, %arg6: memref<16x128xf32, #tpu.memory_space<vmem>>) attributes {dimension_semantics = [#tpu.dimension_semantics<parallel>], iteration_bounds = array<i64: 1>, scalar_prefetch = 0 : i64, scratch_operands = 0 : i64, tpu.core_type = #tpu.core_type<tc>, window_params = [{transform_indices = @transform_0, window_bounds = array<i64: 16, 16>}, {pipeline_mode = #tpu.pipeline_mode<synchronous>, transform_indices = @transform_1, window_bounds = array<i64: 16, 128>}, {pipeline_mode = #tpu.pipeline_mode<synchronous>, transform_indices = @transform_2, window_bounds = array<i64: 1, 128>}, {pipeline_mode = #tpu.pipeline_mode<synchronous>, transform_indices = @transform_3, window_bounds = array<i64: 128, 128>}, {pipeline_mode = #tpu.pipeline_mode<synchronous>, transform_indices = @transform_4, window_bounds = array<i64: 1, 128>}, {transform_indices = @transform_5, window_bounds = array<i64: 16, 128>}]} {
    %c0 = arith.constant 0 : index
    %c0_0 = arith.constant 0 : index
    %0 = vector.load %arg1[%c0, %c0_0] : memref<16x16xbf16, #tpu.memory_space<vmem>>, vector<16x16xbf16>
    %c0_1 = arith.constant 0 : index
    %c0_2 = arith.constant 0 : index
    %1 = vector.load %arg2[%c0_1, %c0_2] : memref<16x128xbf16, #tpu.memory_space<vmem>>, vector<16x128xbf16>
    %cst = arith.constant dense<0.000000e+00> : vector<16x128xf32>
    %2 = tpu.matmul %0, %1, %cst {dimension_numbers = #tpu.dot_dimension_numbers<[1], [0], [0], [1], [0, 0, 1, 1], [], []>} : vector<16x16xbf16>, vector<16x128xbf16>, vector<16x128xf32> -> vector<16x128xf32>
    %c0_3 = arith.constant 0 : index
    %c0_4 = arith.constant 0 : index
    %3 = vector.load %arg3[%c0_3, %c0_4] : memref<1x128xf32, #tpu.memory_space<vmem>>, vector<1x128xf32>
    %4 = vector.broadcast %3 : vector<1x128xf32> to vector<16x128xf32>
    %5 = arith.addf %2, %4 : vector<16x128xf32>
    %cst_5 = arith.constant 0.000000e+00 : f32
    %6 = vector.broadcast %cst_5 : f32 to vector<16x128xf32>
    %7 = arith.maximumf %5, %6 : vector<16x128xf32>
    %8 = arith.truncf %7 : vector<16x128xf32> to vector<16x128xbf16>
    %c0_6 = arith.constant 0 : index
    %c0_7 = arith.constant 0 : index
    %9 = vector.load %arg4[%c0_6, %c0_7] : memref<128x128xbf16, #tpu.memory_space<vmem>>, vector<128x128xbf16>
    %cst_8 = arith.constant dense<0.000000e+00> : vector<16x128xf32>
    %10 = tpu.matmul %8, %9, %cst_8 {dimension_numbers = #tpu.dot_dimension_numbers<[1], [0], [0], [1], [0, 0, 1, 1], [], []>} : vector<16x128xbf16>, vector<128x128xbf16>, vector<16x128xf32> -> vector<16x128xf32>
    %c0_9 = arith.constant 0 : index
    %c0_10 = arith.constant 0 : index
    %11 = vector.load %arg5[%c0_9, %c0_10] : memref<1x128xf32, #tpu.memory_space<vmem>>, vector<1x128xf32>
    %12 = vector.broadcast %11 : vector<1x128xf32> to vector<16x128xf32>
    %13 = arith.addf %10, %12 : vector<16x128xf32>
    %c0_11 = arith.constant 0 : index
    %c0_12 = arith.constant 0 : index
    %14 = vector.load %arg6[%c0_11, %c0_12] : memref<16x128xf32, #tpu.memory_space<vmem>>, vector<16x128xf32>
    tpu.vector_store %arg6[%c0_11, %c0_12], %13 {strides = array<i32>} : memref<16x128xf32, #tpu.memory_space<vmem>>, vector<16x128xf32>,
    return
  }
  func.func @transform_0(%arg0: i32) -> (i32, i32) {
    %c0_i32 = arith.constant 0 : i32
    %c0_i32_0 = arith.constant 0 : i32
    return %arg0, %c0_i32 : i32, i32
  }
  func.func @transform_1(%arg0: i32) -> (i32, i32) {
    %c0_i32 = arith.constant 0 : i32
    %c0_i32_0 = arith.constant 0 : i32
    %c0_i32_1 = arith.constant 0 : i32
    return %c0_i32, %c0_i32_0 : i32, i32
  }
  func.func @transform_2(%arg0: i32) -> (i32, i32) {
    %c0_i32 = arith.constant 0 : i32
    %c0_i32_0 = arith.constant 0 : i32
    %c0_i32_1 = arith.constant 0 : i32
    return %c0_i32, %c0_i32_0 : i32, i32
  }
  func.func @transform_3(%arg0: i32) -> (i32, i32) {
    %c0_i32 = arith.constant 0 : i32
    %c0_i32_0 = arith.constant 0 : i32
    %c0_i32_1 = arith.constant 0 : i32
    return %c0_i32, %c0_i32_0 : i32, i32
  }
  func.func @transform_4(%arg0: i32) -> (i32, i32) {
    %c0_i32 = arith.constant 0 : i32
    %c0_i32_0 = arith.constant 0 : i32
    %c0_i32_1 = arith.constant 0 : i32
    return %c0_i32, %c0_i32_0 : i32, i32
  }
  func.func @transform_5(%arg0: i32) -> (i32, i32) {
    %c0_i32 = arith.constant 0 : i32
    %c0_i32_0 = arith.constant 0 : i32
    return %arg0, %c0_i32 : i32, i32
  }
}

module attributes {stable_mosaic.version = 11 : i64} {
  func.func @mlp_kernel(%arg0: i32, %arg1: memref<16x16xbf16, #tpu.memory_space<vmem>>, %arg2: memref<16x128xbf16, #tpu.memory_space<vmem>>, %arg3: memref<1x128xf32, #tpu.memory_space<vmem>>, %arg4: memref<128x128xbf16, #tpu.memory_space<vmem>>, %arg5: memref<1x128xf32, #tpu.memory_space<vmem>>, %arg6: memref<16x128xf32, #tpu.memory_space<vmem>>) attributes {dimension_semantics = [#tpu.dimension_semantics<parallel>], iteration_bounds = array<i64: 1>, scalar_prefetch = 0 : i64, scratch_operands = 0 : i64, tpu.core_type = #tpu.core_type<tc>, window_params = [{transform_indices = @transform_0, window_bounds = array<i64: 16, 16>}, {pipeline_mode = #tpu.pipeline_mode<synchronous>, transform_indices = @transform_1, window_bounds = array<i64: 16, 128>}, {pipeline_mode = #tpu.pipeline_mode<synchronous>, transform_indices = @transform_2, window_bounds = array<i64: 1, 128>}, {pipeline_mode = #tpu.pipeline_mode<synchronous>, transform_indices = @transform_3, window_bounds = array<i64: 128, 128>}, {pipeline_mode = #tpu.pipeline_mode<synchronous>, transform_indices = @transform_4, window_bounds = array<i64: 1, 128>}, {transform_indices = @transform_5, window_bounds = array<i64: 16, 128>}]} {
    %c0 = arith.constant 0 : index
    %c0_0 = arith.constant 0 : index
    %0 = vector.load %arg1[%c0, %c0_0] : memref<16x16xbf16, #tpu.memory_space<vmem>>, vector<16x16xbf16>
    %c0_1 = arith.constant 0 : index
    %c0_2 = arith.constant 0 : index
    %1 = vector.load %arg2[%c0_1, %c0_2] : memref<16x128xbf16, #tpu.memory_space<vmem>>, vector<16x128xbf16>
    %cst = arith.constant dense<0.000000e+00> : vector<16x128xf32>
    %2 = tpu.matmul %0, %1, %cst {dimension_numbers = #tpu.dot_dimension_numbers<[1], [0], [0], [1], [0, 0, 1, 1], [], []>} : vector<16x16xbf16>, vector<16x128xbf16>, vector<16x128xf32> -> vector<16x128xf32>
    %c0_3 = arith.constant 0 : index
    %c0_4 = arith.constant 0 : index
    %3 = vector.load %arg3[%c0_3, %c0_4] : memref<1x128xf32, #tpu.memory_space<vmem>>, vector<1x128xf32>
    %4 = vector.broadcast %3 : vector<1x128xf32> to vector<16x128xf32>
    %5 = arith.addf %2, %4 : vector<16x128xf32>
    %cst_5 = arith.constant 0.000000e+00 : f32
    %6 = vector.broadcast %cst_5 : f32 to vector<16x128xf32>
    %7 = arith.maximumf %5, %6 : vector<16x128xf32>
    %8 = arith.truncf %7 : vector<16x128xf32> to vector<16x128xbf16>
    %c0_6 = arith.constant 0 : index
    %c0_7 = arith.constant 0 : index
    %9 = vector.load %arg4[%c0_6, %c0_7] : memref<128x128xbf16, #tpu.memory_space<vmem>>, vector<128x128xbf16>
    %cst_8 = arith.constant dense<0.000000e+00> : vector<16x128xf32>
    %10 = tpu.matmul %8, %9, %cst_8 {dimension_numbers = #tpu.dot_dimension_numbers<[1], [0], [0], [1], [0, 0, 1, 1], [], []>} : vector<16x128xbf16>, vector<128x128xbf16>, vector<16x128xf32> -> vector<16x128xf32>
    %c0_9 = arith.constant 0 : index
    %c0_10 = arith.constant 0 : index
    %11 = vector.load %arg5[%c0_9, %c0_10] : memref<1x128xf32, #tpu.memory_space<vmem>>, vector<1x128xf32>
    %12 = vector.broadcast %11 : vector<1x128xf32> to vector<16x128xf32>
    %13 = arith.addf %10, %12 : vector<16x128xf32>
    %c0_11 = arith.constant 0 : index
    %c0_12 = arith.constant 0 : index
    %14 = vector.load %arg6[%c0_11, %c0_12] : memref<16x128xf32, #tpu.memory_space<vmem>>, vector<16x128xf32>
    tpu.vector_store %arg6[%c0_11, %c0_12], %13 {strides = array<i32>} : memref<16x128xf32, #tpu.memory_space<vmem>>, vector<16x128xf32>,
    return
  }
  func.func @transform_0(%arg0: i32) -> (i32, i32) {
    %c0_i32 = arith.constant 0 : i32
    %c0_i32_0 = arith.constant 0 : i32
    return %arg0, %c0_i32 : i32, i32
  }
  func.func @transform_1(%arg0: i32) -> (i32, i32) {
    %c0_i32 = arith.constant 0 : i32
    %c0_i32_0 = arith.constant 0 : i32
    %c0_i32_1 = arith.constant 0 : i32
    return %c0_i32, %c0_i32_0 : i32, i32
  }
  func.func @transform_2(%arg0: i32) -> (i32, i32) {
    %c0_i32 = arith.constant 0 : i32
    %c0_i32_0 = arith.constant 0 : i32
    %c0_i32_1 = arith.constant 0 : i32
    return %c0_i32, %c0_i32_0 : i32, i32
  }
  func.func @transform_3(%arg0: i32) -> (i32, i32) {
    %c0_i32 = arith.constant 0 : i32
    %c0_i32_0 = arith.constant 0 : i32
    %c0_i32_1 = arith.constant 0 : i32
    return %c0_i32, %c0_i32_0 : i32, i32
  }
  func.func @transform_4(%arg0: i32) -> (i32, i32) {
    %c0_i32 = arith.constant 0 : i32
    %c0_i32_0 = arith.constant 0 : i32
    %c0_i32_1 = arith.constant 0 : i32
    return %c0_i32, %c0_i32_0 : i32, i32
  }
  func.func @transform_5(%arg0: i32) -> (i32, i32) {
    %c0_i32 = arith.constant 0 : i32
    %c0_i32_0 = arith.constant 0 : i32
    return %arg0, %c0_i32 : i32, i32
  }
}

</mosaic_0001>

<llo_original>
// kernel: tpu_custom_call.1
$region0: #{tpu_custom_call.1}
  #allocation0 [shape = 'u32[]', space=smem, size = 0x4, offset = 0x4, fixed_abs, tag = 'smem constant byte address 0x4 - core index']
  #allocation1 [shape = 'u32[144,128]{1,0:T(1,128)}', space=vmem, size = 0x12000, scoped, tag = 'internal scratch']
  %s0 = inlined_call_operand.hbm [shape: bf16[16,16], index: 0, kind: input, shape index: {}]
  %s1 = inlined_call_operand.hbm [shape: bf16[16,128], index: 1, kind: input, shape index: {}]
  %s2 = inlined_call_operand.vmem [shape: f32[1,128], index: 2, kind: input, shape index: {}]
  %s3 = inlined_call_operand.hbm [shape: bf16[128,128], index: 3, kind: input, shape index: {}]
  %s4 = inlined_call_operand.vmem [shape: f32[1,128], index: 4, kind: input, shape index: {}]
  %s5 = inlined_call_operand.hbm [shape: f32[16,128], index: 5, kind: output, shape index: {}]
  %s6 = sld [smem:[#allocation0]]
  $region42: #{tpu_custom_call.1} parent=0
    _
  %s8 = ssub.s32 1, %s6
  %s9 = scalar_select 0, %s8, %s6
  $region1: #{tpu_custom_call.1} parent=0
    #allocation2 [shape = 'u8[4096]{0}', space=vmem, size = 0x1000, scoped, tag = 'input window, operand 0, single buffered']
    #allocation3 [shape = 's32[1]{0}', space=sflag, size = 0x4, scoped, tag = 'scoped memory for tpu_custom_call.1']
    #allocation4 [shape = 's32[1]{0}', space=sflag, size = 0x4, scoped, tag = 'scoped memory for tpu_custom_call.1']
    #allocation5 [shape = 'u8[4096]{0}', space=vmem, size = 0x1000, scoped, tag = 'input window, operand 1, single buffered']
    #allocation6 [shape = 's32[1]{0}', space=sflag, size = 0x4, scoped, tag = 'scoped memory for tpu_custom_call.1']
    #allocation7 [shape = 'u8[32768]{0}', space=vmem, size = 0x8000, scoped, tag = 'input window, operand 3, single buffered']
    #allocation8 [shape = 'u8[8192]{0}', space=vmem, size = 0x2000, scoped, tag = 'output window, operand 0, single buffered']
    %10 = vsyncpa [#allocation3], 0
    %11 = vsyncpa [#allocation6], 0
    %12 = vsyncpa [#allocation4], 0
    // Predicated region
    $region2: #{tpu_custom_call.1} parent=1 // pred_check
      _
    $region3: #{tpu_custom_call.1} parent=1 // pred_check_branch
      %14 = sbr.rel (0) target = $region5
    $region4: #{tpu_custom_call.1} parent=1 // pred_region
      %s16 = ssub.s32 128, 128
      %17 = vsyncadd [#allocation3], %s16
      %s18 = sshll.u32 [#allocation2], 4
      %s19 = int_to_ptr.vmem [resolvable:$true] %s18
      %24 = dma.hbm_to_vmem [thread:$0]  %s0, 128, %s19, [#allocation3], 64, 64, 4
    $region5: #{tpu_custom_call.1} parent=1 // pred_fallthru
      _
    // Predicated region
    $region6: #{tpu_custom_call.1} parent=1 // pred_check
      _
    $region7: #{tpu_custom_call.1} parent=1 // pred_check_branch
      %26 = sbr.rel (0) target = $region9
    $region8: #{tpu_custom_call.1} parent=1 // pred_region
      %s28 = ssub.s32 128, 128
      %29 = vsyncadd [#allocation6], %s28
      %s30 = sshll.u32 [#allocation5], 4
      %s31 = int_to_ptr.vmem [resolvable:$true] %s30
      %36 = dma.hbm_to_vmem [thread:$0]  %s1, 128, %s31, [#allocation6], 64, 64, 4
    $region9: #{tpu_custom_call.1} parent=1 // pred_fallthru
      _
    // Predicated region
    $region10: #{tpu_custom_call.1} parent=1 // pred_check
      _
    $region11: #{tpu_custom_call.1} parent=1 // pred_check_branch
      %38 = sbr.rel (0) target = $region13
    $region12: #{tpu_custom_call.1} parent=1 // pred_region
      _
    $region13: #{tpu_custom_call.1} parent=1 // pred_fallthru
      _
    // Predicated region
    $region14: #{tpu_custom_call.1} parent=1 // pred_check
      _
    $region15: #{tpu_custom_call.1} parent=1 // pred_check_branch
      %40 = sbr.rel (0) target = $region17
    $region16: #{tpu_custom_call.1} parent=1 // pred_region
      %s42 = ssub.s32 1024, 1024
      %43 = vsyncadd [#allocation6], %s42
      %s44 = sshll.u32 [#allocation7], 4
      %s45 = int_to_ptr.vmem [resolvable:$true] %s44
      %50 = dma.hbm_to_vmem [thread:$0]  %s3, 1024, %s45, [#allocation6], 64, 64, 4
    $region17: #{tpu_custom_call.1} parent=1 // pred_fallthru
      _
    // Predicated region
    $region18: #{tpu_custom_call.1} parent=1 // pred_check
      _
    $region19: #{tpu_custom_call.1} parent=1 // pred_check_branch
      %52 = sbr.rel (0) target = $region21
    $region20: #{tpu_custom_call.1} parent=1 // pred_region
      _
    $region21: #{tpu_custom_call.1} parent=1 // pred_fallthru
      _
    // Predicated region
    $region22: #{tpu_custom_call.1} parent=1 // pred_check
      _
    $region23: #{tpu_custom_call.1} parent=1 // pred_check_branch
      %54 = sbr.rel (0) target = $region25
    $region24: #{tpu_custom_call.1} parent=1 // pred_region
      %55 = dma.done [#allocation3], 128
    $region25: #{tpu_custom_call.1} parent=1 // pred_fallthru
      _
    // Predicated region
    $region26: #{tpu_custom_call.1} parent=1 // pred_check
      _
    $region27: #{tpu_custom_call.1} parent=1 // pred_check_branch
      %57 = sbr.rel (0) target = $region29
    $region28: #{tpu_custom_call.1} parent=1 // pred_region
      %58 = dma.done [#allocation6], 128
    $region29: #{tpu_custom_call.1} parent=1 // pred_fallthru
      _
    // Predicated region
    $region30: #{tpu_custom_call.1} parent=1 // pred_check
      _
    $region31: #{tpu_custom_call.1} parent=1 // pred_check_branch
      %60 = sbr.rel (0) target = $region33
    $region32: #{tpu_custom_call.1} parent=1 // pred_region
      %61 = dma.done [#allocation6], 1024
    $region33: #{tpu_custom_call.1} parent=1 // pred_fallthru
      _
    %v63 = vld [vmem:[#allocation2] sm:$0xf]
    %v64 = vld [vmem:[#allocation2 + $0x4] sm:$0xf]
    %v65 = vld [vmem:[#allocation5] sm:$0xf]
    %v66 = vld [vmem:[#allocation5 + $0x4] sm:$0xf]
    %v67 = vld [vmem:[%s2] sm:$0x1]
    %v69 = vlaneseq
    %v70 = vshrl.u32 %v69, 7
    %v71 = vsub.s32 0, %v70
    %v72 = vrot.slane %v67, %v71
    %v76 = vunpack.c.l.b16 %v63
    %v77 = vunpack.c.l.b16 %v64
    %v78 = vpack.c.b16 %v77, %v76
    %v81 = vunpack.c.l.b16 %v65
    %v82 = vunpack.c.l.b16 %v66
    %v83 = vpack.c.b16 %v82, %v81
    %vm85 = vcmask 130048
    %v87 = vsel %vm85, %v78, 0
    %89 = vmatprep.subr.bf16.mxu0 0
    %90 = vmatpush1.bf16.msra.mxu0 0
    %91 = vmatprep.subr.bf16.mxu0 0
    %92 = vmatpush1.bf16.msra.mxu0 0
    %93 = vmatprep.subr.bf16.mxu0 0
    %94 = vmatpush1.bf16.msra.mxu0 0
    %95 = vmatprep.subr.bf16.mxu0 0
    %96 = vmatpush1.bf16.msra.mxu0 0
    %97 = vmatprep.subr.bf16.mxu0 0
    %98 = vmatpush1.bf16.msra.mxu0 0
    %99 = vmatprep.subr.bf16.mxu0 0
    %100 = vmatpush1.bf16.msra.mxu0 0
    %101 = vmatprep.subr.bf16.mxu0 0
    %102 = vmatpush1.bf16.msra.mxu0 0
    %103 = vmatprep.subr.bf16.mxu0 0
    %104 = vmatpush1.bf16.msra.mxu0 %v83
    %105 = vmatprep.subr.bf16.mxu0 0
    %106 = vmatpush2.bf16.msra.mxu0 0
    %107 = vmatprep.subr.bf16.mxu0 0
    %108 = vmatpush2.bf16.msra.mxu0 0
    %109 = vmatprep.subr.bf16.mxu0 0
    %110 = vmatpush2.bf16.msra.mxu0 0
    %111 = vmatprep.subr.bf16.mxu0 0
    %112 = vmatpush2.bf16.msra.mxu0 0
    %113 = vmatprep.subr.bf16.mxu0 0
    %114 = vmatpush2.bf16.msra.mxu0 0
    %115 = vmatprep.subr.bf16.mxu0 0
    %116 = vmatpush2.bf16.msra.mxu0 0
    %117 = vmatprep.subr.bf16.mxu0 0
    %118 = vmatpush2.bf16.msra.mxu0 0
    %119 = vmatprep.subr.bf16.mxu0 0
    %120 = vmatpush2.bf16.msra.mxu0 0
    %121 = vmatprep.mubr.bf16.mxu0 0
    %122 = vmatmul.mubr.bf16.gmra.mxu0 %v87
    %v123 = vpop.f32.mrf.mxu0
    %v124 = vadd.f32 %v72, %v123
    %v125 = vpop.f32.mrf.mxu0
    %v126 = vpop.f32.mrf.mxu0
    %v127 = vadd.f32 %v72, %v126
    %v128 = vpop.f32.mrf.mxu0
    %129 = vdwg.mxu0
    %v130 = vmax.f32 %v124, 0.0
    %v131 = vmax.f32 %v127, 0.0
    %v132 = vpack.c.bf16 %v131, %v130
    %v133 = vld [vmem:[#allocation7] sm:$0xf]
    %v134 = vld [vmem:[#allocation7 + $0x4] sm:$0xf]
    %v135 = vld [vmem:[#allocation7 + $0x8] sm:$0xf]
    %v136 = vld [vmem:[#allocation7 + $0xc] sm:$0xf]
    %v137 = vld [vmem:[#allocation7 + $0x10] sm:$0xf]
    %v138 = vld [vmem:[#allocation7 + $0x14] sm:$0xf]
    %v139 = vld [vmem:[#allocation7 + $0x18] sm:$0xf]
    %v140 = vld [vmem:[#allocation7 + $0x1c] sm:$0xf]
    %v141 = vld [vmem:[#allocation7 + $0x20] sm:$0xf]
    %v142 = vld [vmem:[#allocation7 + $0x24] sm:$0xf]
    %v143 = vld [vmem:[#allocation7 + $0x28] sm:$0xf]
    %v144 = vld [vmem:[#allocation7 + $0x2c] sm:$0xf]
    %v145 = vld [vmem:[#allocation7 + $0x30] sm:$0xf]
    %v146 = vld [vmem:[#allocation7 + $0x34] sm:$0xf]
    %v147 = vld [vmem:[#allocation7 + $0x38] sm:$0xf]
    %v148 = vld [vmem:[#allocation7 + $0x3c] sm:$0xf]
    %v149 = vld [vmem:[%s4] sm:$0x1]
    %v151 = vlaneseq
    %v152 = vshrl.u32 %v151, 7
    %v153 = vsub.s32 0, %v152
    %v154 = vrot.slane %v149, %v153
    %v172 = vunpack.c.l.b16 %v133
    %v173 = vunpack.c.l.b16 %v134
    %v174 = vunpack.c.l.b16 %v135
    %v175 = vunpack.c.l.b16 %v136
    %v176 = vunpack.c.l.b16 %v137
    %v177 = vunpack.c.l.b16 %v138
    %v178 = vunpack.c.l.b16 %v139
    %v179 = vunpack.c.l.b16 %v140
    %v180 = vunpack.c.l.b16 %v141
    %v181 = vunpack.c.l.b16 %v142
    %v182 = vunpack.c.l.b16 %v143
    %v183 = vunpack.c.l.b16 %v144
    %v184 = vunpack.c.l.b16 %v145
    %v185 = vunpack.c.l.b16 %v146
    %v186 = vunpack.c.l.b16 %v147
    %v187 = vunpack.c.l.b16 %v148
    %v188 = vpack.c.b16 %v173, %v172
    %v189 = vpack.c.b16 %v175, %v174
    %v190 = vpack.c.b16 %v177, %v176
    %v191 = vpack.c.b16 %v179, %v178
    %v192 = vpack.c.b16 %v181, %v180
    %v193 = vpack.c.b16 %v183, %v182
    %v194 = vpack.c.b16 %v185, %v184
    %v195 = vpack.c.b16 %v187, %v186
    %204 = vmatprep.subr.bf16.mxu0 0
    %205 = vmatpush1.bf16.msra.mxu0 %v195
    %206 = vmatprep.subr.bf16.mxu0 0
    %207 = vmatpush1.bf16.msra.mxu0 %v194
    %208 = vmatprep.subr.bf16.mxu0 0
    %209 = vmatpush1.bf16.msra.mxu0 %v193
    %210 = vmatprep.subr.bf16.mxu0 0
    %211 = vmatpush1.bf16.msra.mxu0 %v192
    %212 = vmatprep.subr.bf16.mxu0 0
    %213 = vmatpush1.bf16.msra.mxu0 %v191
    %214 = vmatprep.subr.bf16.mxu0 0
    %215 = vmatpush1.bf16.msra.mxu0 %v190
    %216 = vmatprep.subr.bf16.mxu0 0
    %217 = vmatpush1.bf16.msra.mxu0 %v189
    %218 = vmatprep.subr.bf16.mxu0 0
    %219 = vmatpush1.bf16.msra.mxu0 %v188
    %220 = vmatprep.subr.bf16.mxu0 0
    %221 = vmatpush2.bf16.msra.mxu0 0
    %222 = vmatprep.subr.bf16.mxu0 0
    %223 = vmatpush2.bf16.msra.mxu0 0
    %224 = vmatprep.subr.bf16.mxu0 0
    %225 = vmatpush2.bf16.msra.mxu0 0
    %226 = vmatprep.subr.bf16.mxu0 0
    %227 = vmatpush2.bf16.msra.mxu0 0
    %228 = vmatprep.subr.bf16.mxu0 0
    %229 = vmatpush2.bf16.msra.mxu0 0
    %230 = vmatprep.subr.bf16.mxu0 0
    %231 = vmatpush2.bf16.msra.mxu0 0
    %232 = vmatprep.subr.bf16.mxu0 0
    %233 = vmatpush2.bf16.msra.mxu0 0
    %234 = vmatprep.subr.bf16.mxu0 0
    %235 = vmatpush2.bf16.msra.mxu0 0
    %236 = vmatprep.mubr.bf16.mxu0 0
    %237 = vmatmul.mubr.bf16.gmra.mxu0 %v132
    %v238 = vpop.f32.mrf.mxu0
    %v239 = vadd.f32 %v154, %v238
    %v240 = vpop.f32.mrf.mxu0
    %v241 = vpop.f32.mrf.mxu0
    %v242 = vadd.f32 %v154, %v241
    %v243 = vpop.f32.mrf.mxu0
    %244 = vdwg.mxu0
    %245 = vst [vmem:[#allocation8] sm:$0xff] %v239
    %246 = vst [vmem:[#allocation8 + $0x8] sm:$0xff] %v242
    // Predicated region
    $region34: #{tpu_custom_call.1} parent=1 // pred_check
      _
    $region35: #{tpu_custom_call.1} parent=1 // pred_check_branch
      %248 = sbr.rel (0) target = $region37
    $region36: #{tpu_custom_call.1} parent=1 // pred_region
      %s250 = ssub.s32 256, 256
      %251 = vsyncadd [#allocation4], %s250
      %s252 = sshll.u32 [#allocation8], 4
      %s253 = int_to_ptr.vmem [resolvable:$true] %s252
      %258 = dma.vmem_to_hbm [thread:$0]  %s253, 256, %s5, [#allocation4], 128, 128, 8
    $region37: #{tpu_custom_call.1} parent=1 // pred_fallthru
      _
    // Predicated region
    $region38: #{tpu_custom_call.1} parent=1 // pred_check
      _
    $region39: #{tpu_custom_call.1} parent=1 // pred_check_branch
      %260 = sbr.rel (0) target = $region41
    $region40: #{tpu_custom_call.1} parent=1 // pred_region
      %261 = dma.done [#allocation4], 256
    $region41: #{tpu_custom_call.1} parent=1 // pred_fallthru
      _
    %262 = vsyncpa [#allocation3], 1
    %263 = vsyncpa [#allocation6], 1
    %264 = vsyncpa [#allocation4], 1

// kernel: tpu_custom_call.1
$region0: #{tpu_custom_call.1}
  #allocation0 [shape = 'u32[]', space=smem, size = 0x4, offset = 0x4, fixed_abs, tag = 'smem constant byte address 0x4 - core index']
  #allocation1 [shape = 'u32[144,128]{1,0:T(1,128)}', space=vmem, size = 0x12000, scoped, tag = 'internal scratch']
  %s0 = inlined_call_operand.hbm [shape: bf16[16,16], index: 0, kind: input, shape index: {}]
  %s1 = inlined_call_operand.hbm [shape: bf16[16,128], index: 1, kind: input, shape index: {}]
  %s2 = inlined_call_operand.vmem [shape: f32[1,128], index: 2, kind: input, shape index: {}]
  %s3 = inlined_call_operand.hbm [shape: bf16[128,128], index: 3, kind: input, shape index: {}]
  %s4 = inlined_call_operand.vmem [shape: f32[1,128], index: 4, kind: input, shape index: {}]
  %s5 = inlined_call_operand.hbm [shape: f32[16,128], index: 5, kind: output, shape index: {}]
  %s6 = sld [smem:[#allocation0]]
  $region42: #{tpu_custom_call.1} parent=0
    _
  %s8 = ssub.s32 1, %s6
  %s9 = scalar_select 0, %s8, %s6
  $region1: #{tpu_custom_call.1} parent=0
    #allocation2 [shape = 'u8[4096]{0}', space=vmem, size = 0x1000, scoped, tag = 'input window, operand 0, single buffered']
    #allocation3 [shape = 's32[1]{0}', space=sflag, size = 0x4, scoped, tag = 'scoped memory for tpu_custom_call.1']
    #allocation4 [shape = 's32[1]{0}', space=sflag, size = 0x4, scoped, tag = 'scoped memory for tpu_custom_call.1']
    #allocation5 [shape = 'u8[4096]{0}', space=vmem, size = 0x1000, scoped, tag = 'input window, operand 1, single buffered']
    #allocation6 [shape = 's32[1]{0}', space=sflag, size = 0x4, scoped, tag = 'scoped memory for tpu_custom_call.1']
    #allocation7 [shape = 'u8[32768]{0}', space=vmem, size = 0x8000, scoped, tag = 'input window, operand 3, single buffered']
    #allocation8 [shape = 'u8[8192]{0}', space=vmem, size = 0x2000, scoped, tag = 'output window, operand 0, single buffered']
    %10 = vsyncpa [#allocation3], 0
    %11 = vsyncpa [#allocation6], 0
    %12 = vsyncpa [#allocation4], 0
    // Predicated region
    $region2: #{tpu_custom_call.1} parent=1 // pred_check
      _
    $region3: #{tpu_custom_call.1} parent=1 // pred_check_branch
      %14 = sbr.rel (0) target = $region5
    $region4: #{tpu_custom_call.1} parent=1 // pred_region
      %s16 = ssub.s32 128, 128
      %17 = vsyncadd [#allocation3], %s16
      %s18 = sshll.u32 [#allocation2], 4
      %s19 = int_to_ptr.vmem [resolvable:$true] %s18
      %24 = dma.hbm_to_vmem [thread:$0]  %s0, 128, %s19, [#allocation3], 64, 64, 4
    $region5: #{tpu_custom_call.1} parent=1 // pred_fallthru
      _
    // Predicated region
    $region6: #{tpu_custom_call.1} parent=1 // pred_check
      _
    $region7: #{tpu_custom_call.1} parent=1 // pred_check_branch
      %26 = sbr.rel (0) target = $region9
    $region8: #{tpu_custom_call.1} parent=1 // pred_region
      %s28 = ssub.s32 128, 128
      %29 = vsyncadd [#allocation6], %s28
      %s30 = sshll.u32 [#allocation5], 4
      %s31 = int_to_ptr.vmem [resolvable:$true] %s30
      %36 = dma.hbm_to_vmem [thread:$0]  %s1, 128, %s31, [#allocation6], 64, 64, 4
    $region9: #{tpu_custom_call.1} parent=1 // pred_fallthru
      _
    // Predicated region
    $region10: #{tpu_custom_call.1} parent=1 // pred_check
      _
    $region11: #{tpu_custom_call.1} parent=1 // pred_check_branch
      %38 = sbr.rel (0) target = $region13
    $region12: #{tpu_custom_call.1} parent=1 // pred_region
      _
    $region13: #{tpu_custom_call.1} parent=1 // pred_fallthru
      _
    // Predicated region
    $region14: #{tpu_custom_call.1} parent=1 // pred_check
      _
    $region15: #{tpu_custom_call.1} parent=1 // pred_check_branch
      %40 = sbr.rel (0) target = $region17
    $region16: #{tpu_custom_call.1} parent=1 // pred_region
      %s42 = ssub.s32 1024, 1024
      %43 = vsyncadd [#allocation6], %s42
      %s44 = sshll.u32 [#allocation7], 4
      %s45 = int_to_ptr.vmem [resolvable:$true] %s44
      %50 = dma.hbm_to_vmem [thread:$0]  %s3, 1024, %s45, [#allocation6], 64, 64, 4
    $region17: #{tpu_custom_call.1} parent=1 // pred_fallthru
      _
    // Predicated region
    $region18: #{tpu_custom_call.1} parent=1 // pred_check
      _
    $region19: #{tpu_custom_call.1} parent=1 // pred_check_branch
      %52 = sbr.rel (0) target = $region21
    $region20: #{tpu_custom_call.1} parent=1 // pred_region
      _
    $region21: #{tpu_custom_call.1} parent=1 // pred_fallthru
      _
    // Predicated region
    $region22: #{tpu_custom_call.1} parent=1 // pred_check
      _
    $region23: #{tpu_custom_call.1} parent=1 // pred_check_branch
      %54 = sbr.rel (0) target = $region25
    $region24: #{tpu_custom_call.1} parent=1 // pred_region
      %55 = dma.done [#allocation3], 128
    $region25: #{tpu_custom_call.1} parent=1 // pred_fallthru
      _
    // Predicated region
    $region26: #{tpu_custom_call.1} parent=1 // pred_check
      _
    $region27: #{tpu_custom_call.1} parent=1 // pred_check_branch
      %57 = sbr.rel (0) target = $region29
    $region28: #{tpu_custom_call.1} parent=1 // pred_region
      %58 = dma.done [#allocation6], 128
    $region29: #{tpu_custom_call.1} parent=1 // pred_fallthru
      _
    // Predicated region
    $region30: #{tpu_custom_call.1} parent=1 // pred_check
      _
    $region31: #{tpu_custom_call.1} parent=1 // pred_check_branch
      %60 = sbr.rel (0) target = $region33
    $region32: #{tpu_custom_call.1} parent=1 // pred_region
      %61 = dma.done [#allocation6], 1024
    $region33: #{tpu_custom_call.1} parent=1 // pred_fallthru
      _
    %v63 = vld [vmem:[#allocation2] sm:$0xf]
    %v64 = vld [vmem:[#allocation2 + $0x4] sm:$0xf]
    %v65 = vld [vmem:[#allocation5] sm:$0xf]
    %v66 = vld [vmem:[#allocation5 + $0x4] sm:$0xf]
    %v67 = vld [vmem:[%s2] sm:$0x1]
    %v69 = vlaneseq
    %v70 = vshrl.u32 %v69, 7
    %v71 = vsub.s32 0, %v70
    %v72 = vrot.slane %v67, %v71
    %v76 = vunpack.c.l.b16 %v63
    %v77 = vunpack.c.l.b16 %v64
    %v78 = vpack.c.b16 %v77, %v76
    %v81 = vunpack.c.l.b16 %v65
    %v82 = vunpack.c.l.b16 %v66
    %v83 = vpack.c.b16 %v82, %v81
    %vm85 = vcmask 130048
    %v87 = vsel %vm85, %v78, 0
    %89 = vmatprep.subr.bf16.mxu0 0
    %90 = vmatpush1.bf16.msra.mxu0 0
    %91 = vmatprep.subr.bf16.mxu0 0
    %92 = vmatpush1.bf16.msra.mxu0 0
    %93 = vmatprep.subr.bf16.mxu0 0
    %94 = vmatpush1.bf16.msra.mxu0 0
    %95 = vmatprep.subr.bf16.mxu0 0
    %96 = vmatpush1.bf16.msra.mxu0 0
    %97 = vmatprep.subr.bf16.mxu0 0
    %98 = vmatpush1.bf16.msra.mxu0 0
    %99 = vmatprep.subr.bf16.mxu0 0
    %100 = vmatpush1.bf16.msra.mxu0 0
    %101 = vmatprep.subr.bf16.mxu0 0
    %102 = vmatpush1.bf16.msra.mxu0 0
    %103 = vmatprep.subr.bf16.mxu0 0
    %104 = vmatpush1.bf16.msra.mxu0 %v83
    %105 = vmatprep.subr.bf16.mxu0 0
    %106 = vmatpush2.bf16.msra.mxu0 0
    %107 = vmatprep.subr.bf16.mxu0 0
    %108 = vmatpush2.bf16.msra.mxu0 0
    %109 = vmatprep.subr.bf16.mxu0 0
    %110 = vmatpush2.bf16.msra.mxu0 0
    %111 = vmatprep.subr.bf16.mxu0 0
    %112 = vmatpush2.bf16.msra.mxu0 0
    %113 = vmatprep.subr.bf16.mxu0 0
    %114 = vmatpush2.bf16.msra.mxu0 0
    %115 = vmatprep.subr.bf16.mxu0 0
    %116 = vmatpush2.bf16.msra.mxu0 0
    %117 = vmatprep.subr.bf16.mxu0 0
    %118 = vmatpush2.bf16.msra.mxu0 0
    %119 = vmatprep.subr.bf16.mxu0 0
    %120 = vmatpush2.bf16.msra.mxu0 0
    %121 = vmatprep.mubr.bf16.mxu0 0
    %122 = vmatmul.mubr.bf16.gmra.mxu0 %v87
    %v123 = vpop.f32.mrf.mxu0
    %v124 = vadd.f32 %v72, %v123
    %v125 = vpop.f32.mrf.mxu0
    %v126 = vpop.f32.mrf.mxu0
    %v127 = vadd.f32 %v72, %v126
    %v128 = vpop.f32.mrf.mxu0
    %129 = vdwg.mxu0
    %v130 = vmax.f32 %v124, 0.0
    %v131 = vmax.f32 %v127, 0.0
    %v132 = vpack.c.bf16 %v131, %v130
    %v133 = vld [vmem:[#allocation7] sm:$0xf]
    %v134 = vld [vmem:[#allocation7 + $0x4] sm:$0xf]
    %v135 = vld [vmem:[#allocation7 + $0x8] sm:$0xf]
    %v136 = vld [vmem:[#allocation7 + $0xc] sm:$0xf]
    %v137 = vld [vmem:[#allocation7 + $0x10] sm:$0xf]
    %v138 = vld [vmem:[#allocation7 + $0x14] sm:$0xf]
    %v139 = vld [vmem:[#allocation7 + $0x18] sm:$0xf]
    %v140 = vld [vmem:[#allocation7 + $0x1c] sm:$0xf]
    %v141 = vld [vmem:[#allocation7 + $0x20] sm:$0xf]
    %v142 = vld [vmem:[#allocation7 + $0x24] sm:$0xf]
    %v143 = vld [vmem:[#allocation7 + $0x28] sm:$0xf]
    %v144 = vld [vmem:[#allocation7 + $0x2c] sm:$0xf]
    %v145 = vld [vmem:[#allocation7 + $0x30] sm:$0xf]
    %v146 = vld [vmem:[#allocation7 + $0x34] sm:$0xf]
    %v147 = vld [vmem:[#allocation7 + $0x38] sm:$0xf]
    %v148 = vld [vmem:[#allocation7 + $0x3c] sm:$0xf]
    %v149 = vld [vmem:[%s4] sm:$0x1]
    %v151 = vlaneseq
    %v152 = vshrl.u32 %v151, 7
    %v153 = vsub.s32 0, %v152
    %v154 = vrot.slane %v149, %v153
    %v172 = vunpack.c.l.b16 %v133
    %v173 = vunpack.c.l.b16 %v134
    %v174 = vunpack.c.l.b16 %v135
    %v175 = vunpack.c.l.b16 %v136
    %v176 = vunpack.c.l.b16 %v137
    %v177 = vunpack.c.l.b16 %v138
    %v178 = vunpack.c.l.b16 %v139
    %v179 = vunpack.c.l.b16 %v140
    %v180 = vunpack.c.l.b16 %v141
    %v181 = vunpack.c.l.b16 %v142
    %v182 = vunpack.c.l.b16 %v143
    %v183 = vunpack.c.l.b16 %v144
    %v184 = vunpack.c.l.b16 %v145
    %v185 = vunpack.c.l.b16 %v146
    %v186 = vunpack.c.l.b16 %v147
    %v187 = vunpack.c.l.b16 %v148
    %v188 = vpack.c.b16 %v173, %v172
    %v189 = vpack.c.b16 %v175, %v174
    %v190 = vpack.c.b16 %v177, %v176
    %v191 = vpack.c.b16 %v179, %v178
    %v192 = vpack.c.b16 %v181, %v180
    %v193 = vpack.c.b16 %v183, %v182
    %v194 = vpack.c.b16 %v185, %v184
    %v195 = vpack.c.b16 %v187, %v186
    %204 = vmatprep.subr.bf16.mxu0 0
    %205 = vmatpush1.bf16.msra.mxu0 %v195
    %206 = vmatprep.subr.bf16.mxu0 0
    %207 = vmatpush1.bf16.msra.mxu0 %v194
    %208 = vmatprep.subr.bf16.mxu0 0
    %209 = vmatpush1.bf16.msra.mxu0 %v193
    %210 = vmatprep.subr.bf16.mxu0 0
    %211 = vmatpush1.bf16.msra.mxu0 %v192
    %212 = vmatprep.subr.bf16.mxu0 0
    %213 = vmatpush1.bf16.msra.mxu0 %v191
    %214 = vmatprep.subr.bf16.mxu0 0
    %215 = vmatpush1.bf16.msra.mxu0 %v190
    %216 = vmatprep.subr.bf16.mxu0 0
    %217 = vmatpush1.bf16.msra.mxu0 %v189
    %218 = vmatprep.subr.bf16.mxu0 0
    %219 = vmatpush1.bf16.msra.mxu0 %v188
    %220 = vmatprep.subr.bf16.mxu0 0
    %221 = vmatpush2.bf16.msra.mxu0 0
    %222 = vmatprep.subr.bf16.mxu0 0
    %223 = vmatpush2.bf16.msra.mxu0 0
    %224 = vmatprep.subr.bf16.mxu0 0
    %225 = vmatpush2.bf16.msra.mxu0 0
    %226 = vmatprep.subr.bf16.mxu0 0
    %227 = vmatpush2.bf16.msra.mxu0 0
    %228 = vmatprep.subr.bf16.mxu0 0
    %229 = vmatpush2.bf16.msra.mxu0 0
    %230 = vmatprep.subr.bf16.mxu0 0
    %231 = vmatpush2.bf16.msra.mxu0 0
    %232 = vmatprep.subr.bf16.mxu0 0
    %233 = vmatpush2.bf16.msra.mxu0 0
    %234 = vmatprep.subr.bf16.mxu0 0
    %235 = vmatpush2.bf16.msra.mxu0 0
    %236 = vmatprep.mubr.bf16.mxu0 0
    %237 = vmatmul.mubr.bf16.gmra.mxu0 %v132
    %v238 = vpop.f32.mrf.mxu0
    %v239 = vadd.f32 %v154, %v238
    %v240 = vpop.f32.mrf.mxu0
    %v241 = vpop.f32.mrf.mxu0
    %v242 = vadd.f32 %v154, %v241
    %v243 = vpop.f32.mrf.mxu0
    %244 = vdwg.mxu0
    %245 = vst [vmem:[#allocation8] sm:$0xff] %v239
    %246 = vst [vmem:[#allocation8 + $0x8] sm:$0xff] %v242
    // Predicated region
    $region34: #{tpu_custom_call.1} parent=1 // pred_check
      _
    $region35: #{tpu_custom_call.1} parent=1 // pred_check_branch
      %248 = sbr.rel (0) target = $region37
    $region36: #{tpu_custom_call.1} parent=1 // pred_region
      %s250 = ssub.s32 256, 256
      %251 = vsyncadd [#allocation4], %s250
      %s252 = sshll.u32 [#allocation8], 4
      %s253 = int_to_ptr.vmem [resolvable:$true] %s252
      %258 = dma.vmem_to_hbm [thread:$0]  %s253, 256, %s5, [#allocation4], 128, 128, 8
    $region37: #{tpu_custom_call.1} parent=1 // pred_fallthru
      _
    // Predicated region
    $region38: #{tpu_custom_call.1} parent=1 // pred_check
      _
    $region39: #{tpu_custom_call.1} parent=1 // pred_check_branch
      %260 = sbr.rel (0) target = $region41
    $region40: #{tpu_custom_call.1} parent=1 // pred_region
      %261 = dma.done [#allocation4], 256
    $region41: #{tpu_custom_call.1} parent=1 // pred_fallthru
      _
    %262 = vsyncpa [#allocation3], 1
    %263 = vsyncpa [#allocation6], 1
    %264 = vsyncpa [#allocation4], 1

</llo_original>
